<compile_context>
chip_gen: v7x
topology: tpu7x:2x2x1
jax: 0.10.0
libtpu: 0.0.40
codegen_flags: <defaults>
</compile_context>

<pallas_src>
import functools

import jax
import jax.numpy as jnp
import numpy as np
from jax.experimental import pallas as pl
from jax.experimental.pallas import tpu as pltpu

_MIN_GRID_STEPS = 8        # >= 2 TensorCores (v7x) x ~4-deep DMA/compute overlap
_LANE = 128
_MIB = 1024 * 1024


def _round_up(v, m):
    return ((v + m - 1) // m) * m


def _sublane_align(itemsize):
    # Sub-32-bit dtypes pack 2/4 rows per sublane; keep the tiled T dim aligned.
    if itemsize >= 4:
        return 8
    if itemsize == 2:
        return 16
    return 32


def _tpu_vmem_capacity_bytes():
    try:
        return int(pltpu.get_tpu_info().vmem_capacity_bytes)
    except Exception:
        return 64 * _MIB   # conservative default (v7x per-core VMEM)


def _block_budget_bytes(vmem_capacity):
    # v7x-class parts (64 MiB/core): keep double-buffered in+out (+ f32 scratch)
    # around ~32 MiB.  v5e/v6e (128 MiB physical) can go substantially larger.
    if vmem_capacity <= 64 * _MIB:
        return 32 * _MIB
    return 80 * _MIB


def _pick_t_tile(B, C, T, F, itemsize, block_budget):
    """Largest aligned T tile that fits the per-generation VMEM budget while
    keeping enough grid steps for pipelining / megacore sharding."""
    align = _sublane_align(itemsize)
    f_pad = _round_up(F, _LANE)            # Mosaic pads a narrow F to full lanes
    # Resident VMEM per t-row: double-buffered input + output blocks plus ~2
    # f32 working slabs the elementwise chain materializes.
    per_row = C * f_pad * (2 * itemsize + 2 * itemsize + 8)
    max_rows = max(align, block_budget // per_row)
    # Keep >= _MIN_GRID_STEPS grid steps so both v7x cores get work and the
    # DMA/compute pipeline has blocks to overlap, even when all of T fits.
    nt_target = max(1, -(-_MIN_GRID_STEPS // max(1, B)))
    cap_rows = max(align, -(-T // nt_target))
    rows = min(T, max_rows, cap_rows)
    if rows >= T:
        return T                            # one full-T block per batch element
    return max(align, (rows // align) * align)


def _ln4dcf_kernel(x_ref, g_ref, b_ref, o_ref, *, eps, inv_cf):
    """One (b, t-tile) slab: x_ref [1, C, Tt, F] -> o_ref [1, C, Tt, F]."""
    # ---- statistics: single pass, f32 accumulation ---------------------------
    xf = x_ref[0].astype(jnp.float32)                    # [C, Tt, F]
    # Reduce C first with plain VPU vreg adds ...
    s1 = jnp.sum(xf, axis=0, keepdims=True)              # [1, Tt, F]  sum_c x
    s2 = jnp.sum(xf * xf, axis=0, keepdims=True)         # [1, Tt, F]  sum_c x^2
    # ... then a single cross-lane (F) reduce per statistic.
    mu = jnp.sum(s1, axis=2, keepdims=True) * inv_cf     # [1, Tt, 1]
    ex2 = jnp.sum(s2, axis=2, keepdims=True) * inv_cf    # [1, Tt, 1]
    var = jnp.maximum(ex2 - mu * mu, 0.0)
    inv_std = jax.lax.rsqrt(var + eps)                   # EUP slot

    # ---- normalize / scale / shift (re-read x_ref; params already f32) -------
    g = g_ref[0]                                         # [C, 1, F] f32
    b = b_ref[0]                                         # [C, 1, F] f32
    xn = (x_ref[0].astype(jnp.float32) - mu) * inv_std   # [C, Tt, F]
    o_ref[0] = (xn * g + b).astype(o_ref.dtype)


def layer_norm_4d_cf(x, gamma, beta, *, eps=1e-5, t_tile=None):
    """LayerNormalization4DCF forward.

    x     : [B, C, T, F]
    gamma : [1, C, 1, F]
    beta  : [1, C, 1, F]
    returns [B, C, T, F]
    """
    B, C, T, F = x.shape
    assert gamma.shape == (1, C, 1, F), gamma.shape
    assert beta.shape == (1, C, 1, F), beta.shape

    # Cast the (tiny) parameters to f32 once, outside the kernel.
    gamma32 = gamma.astype(jnp.float32)
    beta32 = beta.astype(jnp.float32)

    itemsize = x.dtype.itemsize
    cap = _tpu_vmem_capacity_bytes()
    budget = _block_budget_bytes(cap)
    if t_tile is None:
        t_tile = _pick_t_tile(B, C, T, F, itemsize, budget)
    align = _sublane_align(itemsize)
    assert t_tile == T or t_tile % align == 0, (t_tile, align)

    n_t = pl.cdiv(T, t_tile)   # partial final block is fine: stats are per-t

    # Raise the scoped-VMEM limit to match the chosen blocks (+ headroom),
    # staying inside this generation's physical capacity.
    f_pad = _round_up(F, _LANE)
    slab = C * f_pad * t_tile
    est = (2 * slab * itemsize          # double-buffered input blocks
           + 2 * slab * itemsize        # double-buffered output blocks
           + 2 * slab * 4               # f32 working slabs
           + 4 * C * f_pad * 4)         # gamma/beta blocks
    vmem_limit = int(min(cap - 8 * _MIB, max(32 * _MIB, est + 16 * _MIB)))
    vmem_limit = max(vmem_limit, 16 * _MIB)

    kernel = functools.partial(
        _ln4dcf_kernel, eps=float(eps), inv_cf=1.0 / float(C * F)
    )

    n_elem = B * C * T * F
    cost = pl.CostEstimate(
        flops=int(8 * n_elem),                  # sums, squares, normalize, affine
        transcendentals=int(B * T),             # one rsqrt per (b, t)
        bytes_accessed=int(2 * n_elem * itemsize + gamma32.size * 4 + beta32.size * 4),
    )

    return pl.pallas_call(
        kernel,
        out_shape=jax.ShapeDtypeStruct((B, C, T, F), x.dtype),
        grid_spec=pltpu.PrefetchScalarGridSpec(
            num_scalar_prefetch=0,
            grid=(B, n_t),
            in_specs=[
                pl.BlockSpec((1, C, t_tile, F), lambda b, t: (b, 0, t, 0)),
                pl.BlockSpec((1, C, 1, F), lambda b, t: (0, 0, 0, 0)),
                pl.BlockSpec((1, C, 1, F), lambda b, t: (0, 0, 0, 0)),
            ],
            out_specs=pl.BlockSpec((1, C, t_tile, F), lambda b, t: (b, 0, t, 0)),
        ),
        compiler_params=pltpu.CompilerParams(
            dimension_semantics=("parallel", "parallel"),
            vmem_limit_bytes=vmem_limit,
        ),
        cost_estimate=cost,
    )(x, gamma32, beta32)


def layer_norm_4d_cf_ref(x, gamma, beta, *, eps=1e-5):
    """Pure-JAX reference matching the PyTorch module."""
    xf = x.astype(jnp.float32)
    mu = jnp.mean(xf, axis=(1, 3), keepdims=True)
    var = jnp.mean((xf - mu) ** 2, axis=(1, 3), keepdims=True)  # unbiased=False
    out = (xf - mu) / jnp.sqrt(var + eps) * gamma.astype(jnp.float32) \
        + beta.astype(jnp.float32)
    return out.astype(x.dtype)


if __name__ == "__main__":
    eps = 1e-5
    key = jax.random.PRNGKey(0)
    kx, kg, kb, kx2 = jax.random.split(key, 4)

    # Case 1: f32, shapes consistent with the module (x [B,C,T,F], params [1,C,1,F]).
    B, C, T, F = 2, 4, 16, 16
    x = jax.random.normal(kx, (B, C, T, F), jnp.float32)
    # Module inits gamma=1, beta=0; use perturbed values for a stronger check.
    gamma = 1.0 + 0.1 * jax.random.normal(kg, (1, C, 1, F), jnp.float32)
    beta = 0.1 * jax.random.normal(kb, (1, C, 1, F), jnp.float32)

    out = layer_norm_4d_cf(x, gamma, beta, eps=eps)
    jax.block_until_ready(out)
    ref = layer_norm_4d_cf_ref(x, gamma, beta, eps=eps)
    np.testing.assert_allclose(np.asarray(out), np.asarray(ref), rtol=1e-4, atol=1e-5)
    assert out.shape == (B, C, T, F)

    # Case 2: bf16 input — exercises the 16-row tile alignment path (multi-step grid).
    B2, C2, T2, F2 = 2, 4, 32, 16
    x2 = jax.random.normal(kx2, (B2, C2, T2, F2), jnp.float32).astype(jnp.bfloat16)
    out2 = layer_norm_4d_cf(x2, gamma, beta, eps=eps)
    jax.block_until_ready(out2)
    ref2 = layer_norm_4d_cf_ref(x2, gamma, beta, eps=eps)
    np.testing.assert_allclose(
        np.asarray(out2.astype(jnp.float32)),
        np.asarray(ref2.astype(jnp.float32)),
        rtol=5e-2, atol=5e-2,
    )

    print("KERNEL_OK")
</pallas_src>

<mosaic_0001>
module attributes {stable_mosaic.version = 11 : i64} {
  func.func @_ln4dcf_kernel(%arg0: i32, %arg1: i32, %arg2: memref<1x4x8x16xf32, #tpu.memory_space<vmem>>, %arg3: memref<1x4x1x16xf32, #tpu.memory_space<vmem>>, %arg4: memref<1x4x1x16xf32, #tpu.memory_space<vmem>>, %arg5: memref<1x4x8x16xf32, #tpu.memory_space<vmem>>) attributes {dimension_semantics = [#tpu.dimension_semantics<parallel>, #tpu.dimension_semantics<parallel>], iteration_bounds = array<i64: 2, 2>, scalar_prefetch = 0 : i64, scratch_operands = 0 : i64, tpu.core_type = #tpu.core_type<tc>, window_params = [{transform_indices = @transform_0, window_bounds = array<i64: 1, 4, 8, 16>}, {pipeline_mode = #tpu.pipeline_mode<synchronous>, transform_indices = @transform_1, window_bounds = array<i64: 1, 4, 1, 16>}, {pipeline_mode = #tpu.pipeline_mode<synchronous>, transform_indices = @transform_2, window_bounds = array<i64: 1, 4, 1, 16>}, {transform_indices = @transform_3, window_bounds = array<i64: 1, 4, 8, 16>}]} {
    %c0 = arith.constant 0 : index
    %c0_0 = arith.constant 0 : index
    %c0_1 = arith.constant 0 : index
    %c0_2 = arith.constant 0 : index
    %0 = vector.load %arg2[%c0, %c0_0, %c0_1, %c0_2] : memref<1x4x8x16xf32, #tpu.memory_space<vmem>>, vector<1x4x8x16xf32>
    %1 = vector.shape_cast %0 : vector<1x4x8x16xf32> to vector<4x8x16xf32>
    %cst = arith.constant dense<0.000000e+00> : vector<8x16xf32>
    %2 = vector.multi_reduction <add>, %1, %cst [0] : vector<4x8x16xf32> to vector<8x16xf32>
    %3 = vector.shape_cast %2 : vector<8x16xf32> to vector<1x8x16xf32>
    %4 = arith.mulf %1, %1 : vector<4x8x16xf32>
    %cst_3 = arith.constant dense<0.000000e+00> : vector<8x16xf32>
    %5 = vector.multi_reduction <add>, %4, %cst_3 [0] : vector<4x8x16xf32> to vector<8x16xf32>
    %6 = vector.shape_cast %5 : vector<8x16xf32> to vector<1x8x16xf32>
    %cst_4 = arith.constant dense<0.000000e+00> : vector<1x8xf32>
    %7 = vector.multi_reduction <add>, %3, %cst_4 [2] : vector<1x8x16xf32> to vector<1x8xf32>
    %8 = vector.shape_cast %7 : vector<1x8xf32> to vector<1x8x1xf32>
    %cst_5 = arith.constant 1.562500e-02 : f32
    %9 = vector.broadcast %cst_5 : f32 to vector<1x8x1xf32>
    %10 = arith.mulf %8, %9 : vector<1x8x1xf32>
    %cst_6 = arith.constant dense<0.000000e+00> : vector<1x8xf32>
    %11 = vector.multi_reduction <add>, %6, %cst_6 [2] : vector<1x8x16xf32> to vector<1x8xf32>
    %12 = vector.shape_cast %11 : vector<1x8xf32> to vector<1x8x1xf32>
    %cst_7 = arith.constant 1.562500e-02 : f32
    %13 = vector.broadcast %cst_7 : f32 to vector<1x8x1xf32>
    %14 = arith.mulf %12, %13 : vector<1x8x1xf32>
    %15 = arith.mulf %10, %10 : vector<1x8x1xf32>
    %16 = arith.subf %14, %15 : vector<1x8x1xf32>
    %cst_8 = arith.constant 0.000000e+00 : f32
    %17 = vector.broadcast %cst_8 : f32 to vector<1x8x1xf32>
    %18 = arith.maximumf %16, %17 : vector<1x8x1xf32>
    %cst_9 = arith.constant 9.99999974E-6 : f32
    %19 = vector.broadcast %cst_9 : f32 to vector<1x8x1xf32>
    %20 = arith.addf %18, %19 : vector<1x8x1xf32>
    %21 = math.rsqrt %20 : vector<1x8x1xf32>
    %c0_10 = arith.constant 0 : index
    %c0_11 = arith.constant 0 : index
    %c0_12 = arith.constant 0 : index
    %c0_13 = arith.constant 0 : index
    %22 = vector.load %arg3[%c0_10, %c0_11, %c0_12, %c0_13] : memref<1x4x1x16xf32, #tpu.memory_space<vmem>>, vector<1x4x1x16xf32>
    %23 = vector.shape_cast %22 : vector<1x4x1x16xf32> to vector<4x1x16xf32>
    %c0_14 = arith.constant 0 : index
    %c0_15 = arith.constant 0 : index
    %c0_16 = arith.constant 0 : index
    %c0_17 = arith.constant 0 : index
    %24 = vector.load %arg4[%c0_14, %c0_15, %c0_16, %c0_17] : memref<1x4x1x16xf32, #tpu.memory_space<vmem>>, vector<1x4x1x16xf32>
    %25 = vector.shape_cast %24 : vector<1x4x1x16xf32> to vector<4x1x16xf32>
    %c0_18 = arith.constant 0 : index
    %c0_19 = arith.constant 0 : index
    %c0_20 = arith.constant 0 : index
    %c0_21 = arith.constant 0 : index
    %26 = vector.load %arg2[%c0_18, %c0_19, %c0_20, %c0_21] : memref<1x4x8x16xf32, #tpu.memory_space<vmem>>, vector<1x4x8x16xf32>
    %27 = vector.shape_cast %26 : vector<1x4x8x16xf32> to vector<4x8x16xf32>
    %28 = vector.broadcast %10 : vector<1x8x1xf32> to vector<4x8x16xf32>
    %29 = arith.subf %27, %28 : vector<4x8x16xf32>
    %30 = vector.broadcast %21 : vector<1x8x1xf32> to vector<4x8x16xf32>
    %31 = arith.mulf %29, %30 : vector<4x8x16xf32>
    %32 = vector.broadcast %23 : vector<4x1x16xf32> to vector<4x8x16xf32>
    %33 = arith.mulf %31, %32 : vector<4x8x16xf32>
    %34 = vector.broadcast %25 : vector<4x1x16xf32> to vector<4x8x16xf32>
    %35 = arith.addf %33, %34 : vector<4x8x16xf32>
    %c0_22 = arith.constant 0 : index
    %c0_23 = arith.constant 0 : index
    %c0_24 = arith.constant 0 : index
    %c0_25 = arith.constant 0 : index
    %36 = vector.load %arg5[%c0_22, %c0_23, %c0_24, %c0_25] : memref<1x4x8x16xf32, #tpu.memory_space<vmem>>, vector<1x4x8x16xf32>
    %37 = vector.shape_cast %36 : vector<1x4x8x16xf32> to vector<4x8x16xf32>
    %38 = vector.shape_cast %35 : vector<4x8x16xf32> to vector<1x4x8x16xf32>
    tpu.vector_store %arg5[%c0_22, %c0_23, %c0_24, %c0_25], %38 {strides = array<i32>} : memref<1x4x8x16xf32, #tpu.memory_space<vmem>>, vector<1x4x8x16xf32>,
    return
  }
  func.func @transform_0(%arg0: i32, %arg1: i32) -> (i32, i32, i32, i32) {
    %c0_i32 = arith.constant 0 : i32
    %c0_i32_0 = arith.constant 0 : i32
    %c0_i32_1 = arith.constant 0 : i32
    return %arg0, %c0_i32, %arg1, %c0_i32_0 : i32, i32, i32, i32
  }
  func.func @transform_1(%arg0: i32, %arg1: i32) -> (i32, i32, i32, i32) {
    %c0_i32 = arith.constant 0 : i32
    %c0_i32_0 = arith.constant 0 : i32
    %c0_i32_1 = arith.constant 0 : i32
    %c0_i32_2 = arith.constant 0 : i32
    %c0_i32_3 = arith.constant 0 : i32
    return %c0_i32, %c0_i32_0, %c0_i32_1, %c0_i32_2 : i32, i32, i32, i32
  }
  func.func @transform_2(%arg0: i32, %arg1: i32) -> (i32, i32, i32, i32) {
    %c0_i32 = arith.constant 0 : i32
    %c0_i32_0 = arith.constant 0 : i32
    %c0_i32_1 = arith.constant 0 : i32
    %c0_i32_2 = arith.constant 0 : i32
    %c0_i32_3 = arith.constant 0 : i32
    return %c0_i32, %c0_i32_0, %c0_i32_1, %c0_i32_2 : i32, i32, i32, i32
  }
  func.func @transform_3(%arg0: i32, %arg1: i32) -> (i32, i32, i32, i32) {
    %c0_i32 = arith.constant 0 : i32
    %c0_i32_0 = arith.constant 0 : i32
    %c0_i32_1 = arith.constant 0 : i32
    return %arg0, %c0_i32, %arg1, %c0_i32_0 : i32, i32, i32, i32
  }
}

</mosaic_0001>

<llo_original>
// kernel: tpu_custom_call.1
$region0: #{tpu_custom_call.1}
  #allocation0 [shape = 'u32[]', space=smem, size = 0x4, offset = 0x4, fixed_abs, tag = 'smem constant byte address 0x4 - core index']
  #allocation1 [shape = 'u32[144,128]{1,0:T(1,128)}', space=vmem, size = 0x12000, scoped, tag = 'internal scratch']
  %s0 = inlined_call_operand.hbm [shape: f32[2,4,16,16], index: 0, kind: input, shape index: {}]
  %s1 = inlined_call_operand.hbm [shape: f32[1,4,1,16], index: 1, kind: input, shape index: {}]
  %s2 = inlined_call_operand.vmem [shape: f32[1,4,1,16], index: 2, kind: input, shape index: {}]
  %s3 = inlined_call_operand.hbm [shape: f32[2,4,16,16], index: 3, kind: output, shape index: {}]
  %s4 = sld [smem:[#allocation0]]
  $region53: #{tpu_custom_call.1} parent=0
    _
  %s6 = ssub.s32 1, %s4
  %s7 = scalar_select 0, %s6, %s4
  $region1: #{tpu_custom_call.1} parent=0
    #allocation2 [shape = 'u8[32768]{0}', space=vmem, size = 0x8000, scoped, tag = 'input window, operand 0']
    #allocation3 [shape = 's32[2]{0}', space=sflag, size = 0x8, scoped, tag = 'scoped memory for tpu_custom_call.1']
    #allocation4 [shape = 's32[2]{0}', space=sflag, size = 0x8, scoped, tag = 'scoped memory for tpu_custom_call.1']
    #allocation5 [shape = 'u8[2048]{0}', space=vmem, size = 0x800, scoped, tag = 'input window, operand 1, single buffered']
    #allocation6 [shape = 's32[1]{0}', space=sflag, size = 0x4, scoped, tag = 'scoped memory for tpu_custom_call.1']
    #allocation7 [shape = 'u8[32768]{0}', space=vmem, size = 0x8000, scoped, tag = 'output window, operand 0']
    %8 = vsyncpa [#allocation3], 0
    %s9 = scalar_lea.sflag [#allocation3], 1
    %10 = vsyncpa %s9, 0
    %11 = vsyncpa [#allocation6], 0
    %12 = vsyncpa [#allocation4], 0
    %s13 = scalar_lea.sflag [#allocation4], 1
    %14 = vsyncpa %s13, 0
    loop: start=0, step=1, limit=6
    $region2: #{tpu_custom_call.1} parent=1 // loop_pre_header
      _
    $region3: #{tpu_custom_call.1} parent=1 // loop_header
      %s16 = sphi 0, %s20
      %p17 = scmp.ge.s32.totalorder %s16, 6
      %s23 = sphi 0, %s35
      %s24 = sphi 0, %s31
      %s25 = sphi 0, %s23
      %s26 = sphi 0, %s24
      %s27 = sphi 0, %s25
      %s28 = sphi 0, %s26
      %s40 = sphi 0, %s42
      %s43 = sphi 0, %s40
      %s44 = sphi 0, %s43
      %s60 = sphi 0, %s44
      %s64 = sphi 0, %s64
      %s66 = sphi 0, %s64
      %s67 = sphi 0, %s66
      %s81 = sphi 0, %s67
      %s85 = sphi 0, %s85
      %s87 = sphi 0, %s85
      %s88 = sphi 0, %s87
      %s102 = sphi 0, %s88
      %s110 = sphi 0, %s112
      %s113 = sphi 0, %s110
      %s114 = sphi 0, %s113
      %s130 = sphi 0, %s114
    $region4: #{tpu_custom_call.1} parent=1 // loop_header_branch
      %19 = sbr.rel (%p17) target = $region8
    $region5: #{tpu_custom_call.1} parent=1 // loop_body
      %s21 = ssub.s32 %s16, 1
      %s22 = ssub.s32 %s16, 2
      %s29 = sadd.s32 1, %s24
      %p30 = scmp.ge.s32.totalorder %s29, 2
      %s31 = scalar_select %p30, 0, %s29
      %s32 = sadd.s32 1, %s23
      %s33 = scalar_select %p30, %s32, %s23
      %p34 = scmp.ge.s32.totalorder %s33, 2
      %s35 = scalar_select %p34, 0, %s33
      %s36 = ssub.s32 %s23, %s35
      %s37 = ssub.s32 %s24, %s31
      %s38 = sor.u32 %s36, %s37
      %p39 = scmp.eq.s32.totalorder %s38, 0
      %s41 = sadd.s32 %s40, 1
      %s42 = scalar_select %p39, %s40, %s41
      %p45 = pneg %p39
      %p46 = scmp.eq.s32.totalorder %s16, 3
      %p47 = por %p45, %p46
      %p48 = scmp.ne.s32.totalorder %s40, %s43
      %p49 = scmp.eq.s32.totalorder %s16, 0
      %p50 = por %p48, %p49
      %p51 = scmp.ne.s32.totalorder %s40, %s43
      %p52 = scmp.eq.s32.totalorder %s21, 3
      %p53 = por %p51, %p52
      %p54 = scmp.ne.s32.totalorder %s43, %s44
      %p55 = scmp.eq.s32.totalorder %s21, 0
      %p56 = por %p54, %p55
      %p57 = scmp.ne.s32.totalorder %s43, %s44
      %p58 = scmp.eq.s32.totalorder %s22, 3
      %p59 = por %p57, %p58
      %p61 = scmp.ne.s32.totalorder %s44, %s60
      %p62 = scmp.eq.s32.totalorder %s22, 0
      %p63 = por %p61, %p62
      %s65 = sadd.s32 %s64, 1
      %p68 = scmp.eq.s32.totalorder %s16, 3
      %p69 = scmp.ne.s32.totalorder %s64, %s66
      %p70 = scmp.eq.s32.totalorder %s16, 0
      %p71 = por %p69, %p70
      %p72 = scmp.ne.s32.totalorder %s64, %s66
      %p73 = scmp.eq.s32.totalorder %s21, 3
      %p74 = por %p72, %p73
      %p75 = scmp.ne.s32.totalorder %s66, %s67
      %p76 = scmp.eq.s32.totalorder %s21, 0
      %p77 = por %p75, %p76
      %p78 = scmp.ne.s32.totalorder %s66, %s67
      %p79 = scmp.eq.s32.totalorder %s22, 3
      %p80 = por %p78, %p79
      %p82 = scmp.ne.s32.totalorder %s67, %s81
      %p83 = scmp.eq.s32.totalorder %s22, 0
      %p84 = por %p82, %p83
      %s86 = sadd.s32 %s85, 1
      %p89 = scmp.eq.s32.totalorder %s16, 3
      %p90 = scmp.ne.s32.totalorder %s85, %s87
      %p91 = scmp.eq.s32.totalorder %s16, 0
      %p92 = por %p90, %p91
      %p93 = scmp.ne.s32.totalorder %s85, %s87
      %p94 = scmp.eq.s32.totalorder %s21, 3
      %p95 = por %p93, %p94
      %p96 = scmp.ne.s32.totalorder %s87, %s88
      %p97 = scmp.eq.s32.totalorder %s21, 0
      %p98 = por %p96, %p97
      %p99 = scmp.ne.s32.totalorder %s87, %s88
      %p100 = scmp.eq.s32.totalorder %s22, 3
      %p101 = por %p99, %p100
      %p103 = scmp.ne.s32.totalorder %s88, %s102
      %p104 = scmp.eq.s32.totalorder %s22, 0
      %p105 = por %p103, %p104
      %s106 = ssub.s32 %s23, %s35
      %s107 = ssub.s32 %s24, %s31
      %s108 = sor.u32 %s106, %s107
      %p109 = scmp.eq.s32.totalorder %s108, 0
      %s111 = sadd.s32 %s110, 1
      %s112 = scalar_select %p109, %s110, %s111
      %p115 = pneg %p109
      %p116 = scmp.eq.s32.totalorder %s16, 3
      %p117 = por %p115, %p116
      %p118 = scmp.ne.s32.totalorder %s110, %s113
      %p119 = scmp.eq.s32.totalorder %s16, 0
      %p120 = por %p118, %p119
      %p121 = scmp.ne.s32.totalorder %s110, %s113
      %p122 = scmp.eq.s32.totalorder %s21, 3
      %p123 = por %p121, %p122
      %p124 = scmp.ne.s32.totalorder %s113, %s114
      %p125 = scmp.eq.s32.totalorder %s21, 0
      %p126 = por %p124, %p125
      %p127 = scmp.ne.s32.totalorder %s113, %s114
      %p128 = scmp.eq.s32.totalorder %s22, 3
      %p129 = por %p127, %p128
      %p131 = scmp.ne.s32.totalorder %s114, %s130
      %p132 = scmp.eq.s32.totalorder %s22, 0
      %p133 = por %p131, %p132
      %p134 = scmp.le.s32.totalorder 1, %s16
      %p135 = scmp.lt.s32.totalorder %s16, 5
      %p136 = pnand %p134, %p135
      %p137 = pneg %p136
      // Predicated region
      $region9: #{tpu_custom_call.1} parent=5 // pred_check
        _
      $region10: #{tpu_custom_call.1} parent=5 // pred_check_branch
        %139 = sbr.rel (%p136) target = $region12
      $region11: #{tpu_custom_call.1} parent=5 // pred_region
        %s140 = ssub.s32 %s16, 1
        // Predicated region
        $region13: #{tpu_custom_call.1} parent=11 // pred_check
          %p141 = pneg %p77
        $region14: #{tpu_custom_call.1} parent=11 // pred_check_branch
          %143 = sbr.rel (%p141) target = $region16
        $region15: #{tpu_custom_call.1} parent=11 // pred_region
          %s145 = ssub.s32 64, 64
          %146 = vsyncadd [#allocation6], %s145
          %s147 = sshll.u32 [#allocation5], 4
          %s148 = int_to_ptr.vmem [resolvable:$true] %s147
          %153 = dma.hbm_to_vmem [thread:$0]  %s1, 64, %s148, [#allocation6], 16, 16, 1
        $region16: #{tpu_custom_call.1} parent=11 // pred_fallthru
          _
        // Predicated region
        $region17: #{tpu_custom_call.1} parent=11 // pred_check
          %p154 = pneg %p98
        $region18: #{tpu_custom_call.1} parent=11 // pred_check_branch
          %156 = sbr.rel (%p154) target = $region20
        $region19: #{tpu_custom_call.1} parent=11 // pred_region
          _
        $region20: #{tpu_custom_call.1} parent=11 // pred_fallthru
          _
      $region12: #{tpu_custom_call.1} parent=5 // pred_fallthru
        _
      %p157 = scmp.lt.s32.totalorder %s16, 4
      // Predicated region
      $region21: #{tpu_custom_call.1} parent=5 // pred_check
        %p158 = pneg %p157
      $region22: #{tpu_custom_call.1} parent=5 // pred_check_branch
        %160 = sbr.rel (%p158) target = $region24
      $region23: #{tpu_custom_call.1} parent=5 // pred_region
        // Predicated region
        $region25: #{tpu_custom_call.1} parent=23 // pred_check
          %p161 = pneg %p50
        $region26: #{tpu_custom_call.1} parent=23 // pred_check_branch
          %163 = sbr.rel (%p161) target = $region28
        $region27: #{tpu_custom_call.1} parent=23 // pred_region
          %s164 = sand.u32 %s40, 1
          %s165 = scalar_lea.sflag [#allocation3], %s164
          %s166 = sand.u32 %s40, 1
          %s167 = smul.addr %s166, 32
          %s168 = scalar_lea.vmem [#allocation2], %s167
          %s170 = ssub.s32 512, 512
          %171 = vsyncadd %s165, %s170
          %s172 = smul.addr %s23, 8
          %s173 = sadd.s32 %s24, %s172
          %s174 = smul.addr %s173, 128
          %s175 = scalar_lea.hbm %s0, %s174
          %s176 = sshll.u32 %s168, 4
          %s177 = int_to_ptr.vmem [resolvable:$true] %s176
          %182 = dma.hbm_to_vmem [thread:$0]  %s175, 512, %s177, %s165, 256, 128, 8
        $region28: #{tpu_custom_call.1} parent=23 // pred_fallthru
          _
      $region24: #{tpu_custom_call.1} parent=5 // pred_fallthru
        _
      %p183 = scmp.le.s32.totalorder 1, %s16
      %p184 = scmp.lt.s32.totalorder %s16, 5
      %p185 = pnand %p183, %p184
      %p186 = pneg %p185
      // Predicated region
      $region29: #{tpu_custom_call.1} parent=5 // pred_check
        _
      $region30: #{tpu_custom_call.1} parent=5 // pred_check_branch
        %188 = sbr.rel (%p185) target = $region32
      $region31: #{tpu_custom_call.1} parent=5 // pred_region
        %s189 = ssub.s32 %s16, 1
        %s190 = sand.u32 %s43, 1
        %s191 = scalar_lea.sflag [#allocation3], %s190
        %s192 = sand.u32 %s43, 1
        %s193 = smul.addr %s192, 32
        %s194 = scalar_lea.vmem [#allocation2], %s193
        // Predicated region
        $region33: #{tpu_custom_call.1} parent=31 // pred_check
          %p195 = pneg %p56
        $region34: #{tpu_custom_call.1} parent=31 // pred_check_branch
          %197 = sbr.rel (%p195) target = $region36
        $region35: #{tpu_custom_call.1} parent=31 // pred_region
          %198 = dma.done %s191, 512
        $region36: #{tpu_custom_call.1} parent=31 // pred_fallthru
          _
        // Predicated region
        $region37: #{tpu_custom_call.1} parent=31 // pred_check
          %p199 = pneg %p77
        $region38: #{tpu_custom_call.1} parent=31 // pred_check_branch
          %201 = sbr.rel (%p199) target = $region40
        $region39: #{tpu_custom_call.1} parent=31 // pred_region
          %202 = dma.done [#allocation6], 64
        $region40: #{tpu_custom_call.1} parent=31 // pred_fallthru
          _
        %s203 = sand.u32 %s43, 1
        %s204 = scalar_lea.sflag [#allocation3], %s203
        %s205 = sand.u32 %s43, 1
        %s206 = smul.addr %s205, 32
        %s207 = scalar_lea.vmem [#allocation2], %s206
        %p208 = pneg %p56
        %p209 = pneg %p53
        %p210 = pneg %p77
        %p211 = pneg %p74
        %p212 = pneg %p98
        %p213 = pneg %p95
        %p214 = pneg %p126
        %p215 = pneg %p123
        %s216 = sand.u32 %s113, 1
        %s217 = scalar_lea.sflag [#allocation4], %s216
        %s218 = sand.u32 %s113, 1
        %s219 = smul.addr %s218, 32
        %s220 = scalar_lea.vmem [#allocation7], %s219
        %v221 = vld [vmem:[%s194] sm:$0xff]
        %v222 = vld [vmem:[%s194 + $0x8] sm:$0xff]
        %v223 = vld [vmem:[%s194 + $0x10] sm:$0xff]
        %v224 = vld [vmem:[%s194 + $0x18] sm:$0xff]
        %vm225 = vcmask 130048
        %v226 = vsel %vm225, %v221, 0.0
        %v227 = vsel %vm225, %v222, 0.0
        %v228 = vadd.f32 %v226, %v227
        %v229 = vsel %vm225, %v223, 0.0
        %v230 = vadd.f32 %v228, %v229
        %v231 = vsel %vm225, %v224, 0.0
        %v232 = vadd.f32 %v230, %v231
        %v233 = vmul.f32 %v221, %v221
        %v234 = vmul.f32 %v222, %v222
        %v235 = vmul.f32 %v223, %v223
        %v236 = vmul.f32 %v224, %v224
        %v237 = vsel %vm225, %v233, 0.0
        %v238 = vsel %vm225, %v234, 0.0
        %v239 = vadd.f32 %v237, %v238
        %v240 = vsel %vm225, %v235, 0.0
        %v241 = vadd.f32 %v239, %v240
        %v242 = vsel %vm225, %v236, 0.0
        %v243 = vadd.f32 %v241, %v242
        %v244 = vsel %vm225, %v232, 0.0
        %245 = vadd.xlane.f32.xlu0 %v244
        %v246 = vpop.xlane.xlu0 %245
        %v247 = vmul.f32 %v246, 0.015625
        %v248 = vsel %vm225, %v243, 0.0
        %249 = vadd.xlane.f32.xlu0 %v248
        %v250 = vpop.xlane.xlu0 %249
        %v251 = vmul.f32 %v250, 0.015625
        %v252 = vmul.f32 %v247, %v247
        %v253 = vsub.f32 %v251, %v252
        %v254 = vmax.f32 %v253, 0.0
        %v255 = vadd.f32 %v254, 1e-05
        %v256 = vrsqrt.pop %v255
        %v257 = vld [vmem:[#allocation5] sm:$0x1]
        %v258 = vld [vmem:[#allocation5 + $0x1] sm:$0x1]
        %v259 = vld [vmem:[#allocation5 + $0x2] sm:$0x1]
        %v260 = vld [vmem:[#allocation5 + $0x3] sm:$0x1]
        %v261 = vld [vmem:[%s2] sm:$0x1]
        %v262 = vld [vmem:[%s2 + $0x1] sm:$0x1]
        %v263 = vld [vmem:[%s2 + $0x2] sm:$0x1]
        %v264 = vld [vmem:[%s2 + $0x3] sm:$0x1]
        %v265 = vsub.f32 %v221, %v247
        %v266 = vsub.f32 %v222, %v247
        %v267 = vsub.f32 %v223, %v247
        %v268 = vsub.f32 %v224, %v247
        %v269 = vmul.f32 %v265, %v256
        %v270 = vmul.f32 %v266, %v256
        %v271 = vmul.f32 %v267, %v256
        %v272 = vmul.f32 %v268, %v256
        %v277 = vlaneseq
        %v278 = vshrl.u32 %v277, 7
        %v279 = vsub.s32 0, %v278
        %v280 = vrot.slane %v257, %v279
        %v281 = vlaneseq
        %v282 = vshrl.u32 %v281, 7
        %v283 = vsub.s32 0, %v282
        %v284 = vrot.slane %v258, %v283
        %v285 = vlaneseq
        %v286 = vshrl.u32 %v285, 7
        %v287 = vsub.s32 0, %v286
        %v288 = vrot.slane %v259, %v287
        %v289 = vlaneseq
        %v290 = vshrl.u32 %v289, 7
        %v291 = vsub.s32 0, %v290
        %v292 = vrot.slane %v260, %v291
        %v297 = vmul.f32 %v269, %v280
        %v298 = vmul.f32 %v270, %v284
        %v299 = vmul.f32 %v271, %v288
        %v300 = vmul.f32 %v272, %v292
        %v305 = vlaneseq
        %v306 = vshrl.u32 %v305, 7
        %v307 = vsub.s32 0, %v306
        %v308 = vrot.slane %v261, %v307
        %v309 = vlaneseq
        %v310 = vshrl.u32 %v309, 7
        %v311 = vsub.s32 0, %v310
        %v312 = vrot.slane %v262, %v311
        %v313 = vlaneseq
        %v314 = vshrl.u32 %v313, 7
        %v315 = vsub.s32 0, %v314
        %v316 = vrot.slane %v263, %v315
        %v317 = vlaneseq
        %v318 = vshrl.u32 %v317, 7
        %v319 = vsub.s32 0, %v318
        %v320 = vrot.slane %v264, %v319
        %v325 = vadd.f32 %v297, %v308
        %v326 = vadd.f32 %v298, %v312
        %v327 = vadd.f32 %v299, %v316
        %v328 = vadd.f32 %v300, %v320
        %329 = vst.msk [vmem:[%s220] sm:$0xff] %vm225, %v325
        %330 = vst.msk [vmem:[%s220 + $0x8] sm:$0xff] %vm225, %v326
        %331 = vst.msk [vmem:[%s220 + $0x10] sm:$0xff] %vm225, %v327
        %332 = vst.msk [vmem:[%s220 + $0x18] sm:$0xff] %vm225, %v328
        %s333 = sand.u32 %s113, 1
        %s334 = scalar_lea.sflag [#allocation4], %s333
        %s335 = sand.u32 %s113, 1
        %s336 = smul.addr %s335, 32
        %s337 = scalar_lea.vmem [#allocation7], %s336
        // Predicated region
        $region41: #{tpu_custom_call.1} parent=31 // pred_check
          %p338 = pneg %p123
        $region42: #{tpu_custom_call.1} parent=31 // pred_check_branch
          %340 = sbr.rel (%p338) target = $region44
        $region43: #{tpu_custom_call.1} parent=31 // pred_region
          %s342 = ssub.s32 512, 512
          %343 = vsyncadd %s334, %s342
          %s344 = smul.addr %s25, 8
          %s345 = sadd.s32 %s26, %s344
          %s346 = smul.addr %s345, 128
          %s347 = scalar_lea.hbm %s3, %s346
          %s348 = sshll.u32 %s337, 4
          %s349 = int_to_ptr.vmem [resolvable:$true] %s348
          %354 = dma.vmem_to_hbm [thread:$0]  %s349, 512, %s347, %s334, 128, 256, 8
        $region44: #{tpu_custom_call.1} parent=31 // pred_fallthru
          _
      $region32: #{tpu_custom_call.1} parent=5 // pred_fallthru
        _
      %p355 = scmp.le.s32.totalorder 2, %s16
      // Predicated region
      $region45: #{tpu_custom_call.1} parent=5 // pred_check
        %p356 = pneg %p355
      $region46: #{tpu_custom_call.1} parent=5 // pred_check_branch
        %358 = sbr.rel (%p356) target = $region48
      $region47: #{tpu_custom_call.1} parent=5 // pred_region
        %s359 = ssub.s32 %s16, 2
        // Predicated region
        $region49: #{tpu_custom_call.1} parent=47 // pred_check
          %p360 = pneg %p129
        $region50: #{tpu_custom_call.1} parent=47 // pred_check_branch
          %362 = sbr.rel (%p360) target = $region52
        $region51: #{tpu_custom_call.1} parent=47 // pred_region
          %s363 = sand.u32 %s114, 1
          %s364 = scalar_lea.sflag [#allocation4], %s363
          %s365 = sand.u32 %s114, 1
          %s366 = smul.addr %s365, 32
          %s367 = scalar_lea.vmem [#allocation7], %s366
          %368 = dma.done %s364, 512
        $region52: #{tpu_custom_call.1} parent=47 // pred_fallthru
          _
      $region48: #{tpu_custom_call.1} parent=5 // pred_fallthru
        _
    $region6: #{tpu_custom_call.1} parent=1 // loop_footer
      %s20 = sadd.s32 1, %s16
    $region7: #{tpu_custom_call.1} parent=1 // loop_footer_branch
      %15 = sbr.rel target = $region3
    $region8: #{tpu_custom_call.1} parent=1 // loop_exit
      _
    %369 = vsyncpa [#allocation3], 1
    %s370 = scalar_lea.sflag [#allocation3], 1
    %371 = vsyncpa %s370, 1
    %372 = vsyncpa [#allocation6], 1
    %373 = vsyncpa [#allocation4], 1
    %s374 = scalar_lea.sflag [#allocation4], 1
    %375 = vsyncpa %s374, 1

</llo_original>
